<compile_context>
chip_gen: v7x
topology: tpu7x:2x2x1
jax: 0.10.0
libtpu: 0.0.40
codegen_flags: <defaults>
</compile_context>

<pallas_src>
import functools

import jax
import jax.numpy as jnp
from jax.experimental import pallas as pl
from jax.experimental.pallas import tpu as pltpu


def _logreg_kernel(x_ref, w_ref, b_ref, o_ref):
    # x_ref: (rows, pack*F)  w_ref: (pack*F, pack*T)  b_ref: (1, pack*T)
    logits = jnp.dot(x_ref[...], w_ref[...], preferred_element_type=jnp.float32)
    logits = logits + b_ref[...]            # broadcast (1, pack*T) over rows
    o_ref[...] = jax.nn.sigmoid(logits).astype(o_ref.dtype)


def _round_up(x, m):
    return ((x + m - 1) // m) * m


def _pallas_logreg(x_packed, w_packed, b_packed, rows_per_tile, out_dtype):
    rows_total, f_packed = x_packed.shape
    _, t_packed = w_packed.shape
    grid = (rows_total // rows_per_tile,)
    return pl.pallas_call(
        _logreg_kernel,
        out_shape=jax.ShapeDtypeStruct((rows_total, t_packed), out_dtype),
        grid_spec=pltpu.PrefetchScalarGridSpec(
            num_scalar_prefetch=0,
            grid=grid,
            in_specs=[
                pl.BlockSpec((rows_per_tile, f_packed), lambda i: (i, 0)),  # batch tile
                pl.BlockSpec((f_packed, t_packed), lambda i: (0, 0)),       # resident W
                pl.BlockSpec((1, t_packed), lambda i: (0, 0)),              # resident bias
            ],
            out_specs=pl.BlockSpec((rows_per_tile, t_packed), lambda i: (i, 0)),
        ),
        compiler_params=pltpu.CompilerParams(
            dimension_semantics=("parallel",),
        ),
    )(x_packed, w_packed, b_packed)


@functools.partial(jax.jit, static_argnames=("block_b", "compute_dtype", "out_dtype"))
def multi_logistic_regression(x, weight, bias, *, block_b=8192,
                              compute_dtype=jnp.bfloat16, out_dtype=jnp.float32):
    """sigmoid(x @ weight.T + bias) — multi-head, non-exclusive logistic regression.

    x:      [B, n_factor]
    weight: [n_target, n_factor]   (nn.Linear layout)
    bias:   [n_target]
    returns [B, n_target] probabilities (out_dtype, default float32)
    """
    B, F = x.shape
    T, F2 = weight.shape
    assert F == F2, "feature dims of x and weight must match"

    # Lane-dense packing factor: fold `pack` batch rows per kernel row so that the
    # output last dim becomes pack*T (128 when T | 128) -> unmasked 128-lane stores.
    if 0 < T <= 128 and 128 % T == 0:
        pack = 128 // T
    else:
        pack = 1  # fallback: plain [B, T] layout (still large-tiled)

    # Tile size in *original* rows; must be a multiple of pack*8 for sublane alignment.
    row_align = pack * 8
    blk = _round_up(min(block_b, _round_up(max(B, 1), row_align)), row_align)
    B_pad = _round_up(B, blk)

    x_pad = x if B_pad == B else jnp.pad(x, ((0, B_pad - B), (0, 0)))

    wt = weight.T.astype(compute_dtype)  # [F, T]
    if pack > 1:
        # Block-diagonal weight: W_blk[j*F + f, j'*T + t] = W_t[f, t] * (j == j')
        eye = jnp.eye(pack, dtype=compute_dtype)
        w_in = (eye[:, None, :, None] * wt[None, :, None, :]).reshape(pack * F, pack * T)
        b_in = jnp.tile(bias.astype(jnp.float32), pack).reshape(1, pack * T)
        x_in = x_pad.astype(compute_dtype).reshape(B_pad // pack, pack * F)
    else:
        w_in = wt
        b_in = bias.astype(jnp.float32).reshape(1, T)
        x_in = x_pad.astype(compute_dtype)

    rows_per_tile = blk // pack
    out_packed = _pallas_logreg(x_in, w_in, b_in, rows_per_tile, out_dtype)
    return out_packed.reshape(B_pad, T)[:B]


if __name__ == "__main__":
    # config.n_factor = 32, config.n_target = 16 (small synthetic check)
    n_factor, n_target = 32, 16

    key = jax.random.PRNGKey(0)
    kx, kw, kb = jax.random.split(key, 3)

    # Deterministic init mimicking nn.Linear's uniform(-1/sqrt(fan_in), 1/sqrt(fan_in))
    bound = 1.0 / jnp.sqrt(jnp.float32(n_factor))
    weight = jax.random.uniform(kw, (n_target, n_factor), jnp.float32, -bound, bound)
    bias = jax.random.uniform(kb, (n_target,), jnp.float32, -bound, bound)

    # Reference that uses the same bf16-quantized inputs the kernel feeds the MXU.
    def ref_quantized(xv):
        xq = xv.astype(jnp.bfloat16).astype(jnp.float32)
        wq = weight.astype(jnp.bfloat16).astype(jnp.float32)
        return jax.nn.sigmoid(xq @ wq.T + bias)

    for batch in (8, 37):  # 37 exercises the cdiv + zero-pad path
        x = jax.random.normal(jax.random.fold_in(kx, batch), (batch, n_factor),
                              dtype=jnp.float32)
        out = jax.block_until_ready(multi_logistic_regression(x, weight, bias))
        assert out.shape == (batch, n_target)

        ref_q = ref_quantized(x)
        assert jnp.allclose(out, ref_q, atol=1e-4, rtol=1e-4), \
            f"mismatch vs quantized reference (batch={batch})"

        ref_f32 = jax.nn.sigmoid(x @ weight.T + bias)
        assert jnp.allclose(out, ref_f32, atol=3e-2), \
            f"mismatch vs f32 reference (batch={batch})"

    print("KERNEL_OK")
</pallas_src>

<mosaic_0001>
module attributes {stable_mosaic.version = 11 : i64} {
  func.func @_logreg_kernel(%arg0: i32, %arg1: memref<8x256xbf16, #tpu.memory_space<vmem>>, %arg2: memref<256x128xbf16, #tpu.memory_space<vmem>>, %arg3: memref<1x128xf32, #tpu.memory_space<vmem>>, %arg4: memref<8x128xf32, #tpu.memory_space<vmem>>) attributes {dimension_semantics = [#tpu.dimension_semantics<parallel>], iteration_bounds = array<i64: 1>, scalar_prefetch = 0 : i64, scratch_operands = 0 : i64, tpu.core_type = #tpu.core_type<tc>, window_params = [{transform_indices = @transform_0, window_bounds = array<i64: 8, 256>}, {pipeline_mode = #tpu.pipeline_mode<synchronous>, transform_indices = @transform_1, window_bounds = array<i64: 256, 128>}, {pipeline_mode = #tpu.pipeline_mode<synchronous>, transform_indices = @transform_2, window_bounds = array<i64: 1, 128>}, {transform_indices = @transform_3, window_bounds = array<i64: 8, 128>}]} {
    %c0 = arith.constant 0 : index
    %c0_0 = arith.constant 0 : index
    %0 = vector.load %arg1[%c0, %c0_0] : memref<8x256xbf16, #tpu.memory_space<vmem>>, vector<8x256xbf16>
    %c0_1 = arith.constant 0 : index
    %c0_2 = arith.constant 0 : index
    %1 = vector.load %arg2[%c0_1, %c0_2] : memref<256x128xbf16, #tpu.memory_space<vmem>>, vector<256x128xbf16>
    %cst = arith.constant dense<0.000000e+00> : vector<8x128xf32>
    %2 = tpu.matmul %0, %1, %cst {dimension_numbers = #tpu.dot_dimension_numbers<[1], [0], [0], [1], [0, 0, 1, 1], [], []>} : vector<8x256xbf16>, vector<256x128xbf16>, vector<8x128xf32> -> vector<8x128xf32>
    %c0_3 = arith.constant 0 : index
    %c0_4 = arith.constant 0 : index
    %3 = vector.load %arg3[%c0_3, %c0_4] : memref<1x128xf32, #tpu.memory_space<vmem>>, vector<1x128xf32>
    %4 = vector.broadcast %3 : vector<1x128xf32> to vector<8x128xf32>
    %5 = arith.addf %2, %4 : vector<8x128xf32>
    %6 = arith.negf %5 : vector<8x128xf32>
    %7 = math.exp %6 : vector<8x128xf32>
    %cst_5 = arith.constant 1.000000e+00 : f32
    %8 = vector.broadcast %cst_5 : f32 to vector<8x128xf32>
    %9 = arith.addf %8, %7 : vector<8x128xf32>
    %10 = arith.divf %8, %9 : vector<8x128xf32>
    %c0_6 = arith.constant 0 : index
    %c0_7 = arith.constant 0 : index
    %11 = vector.load %arg4[%c0_6, %c0_7] : memref<8x128xf32, #tpu.memory_space<vmem>>, vector<8x128xf32>
    tpu.vector_store %arg4[%c0_6, %c0_7], %10 {strides = array<i32>} : memref<8x128xf32, #tpu.memory_space<vmem>>, vector<8x128xf32>,
    return
  }
  func.func @transform_0(%arg0: i32) -> (i32, i32) {
    %c0_i32 = arith.constant 0 : i32
    %c0_i32_0 = arith.constant 0 : i32
    return %arg0, %c0_i32 : i32, i32
  }
  func.func @transform_1(%arg0: i32) -> (i32, i32) {
    %c0_i32 = arith.constant 0 : i32
    %c0_i32_0 = arith.constant 0 : i32
    %c0_i32_1 = arith.constant 0 : i32
    return %c0_i32, %c0_i32_0 : i32, i32
  }
  func.func @transform_2(%arg0: i32) -> (i32, i32) {
    %c0_i32 = arith.constant 0 : i32
    %c0_i32_0 = arith.constant 0 : i32
    %c0_i32_1 = arith.constant 0 : i32
    return %c0_i32, %c0_i32_0 : i32, i32
  }
  func.func @transform_3(%arg0: i32) -> (i32, i32) {
    %c0_i32 = arith.constant 0 : i32
    %c0_i32_0 = arith.constant 0 : i32
    return %arg0, %c0_i32 : i32, i32
  }
}

</mosaic_0001>

<llo_original>
// kernel: tile.8
$region0: #{tile.8}
  #allocation0 [shape = 's32[1]{0}', space=sflag, size = 0x4, scoped, tag = 'scoped memory for tile.8']
  %s0 = inlined_call_operand.vmem [shape: f32[16], index: 0, kind: input, shape index: {}]
  %s1 = inlined_call_operand.vmem [shape: f32[8,16], index: 1, kind: output, shape index: {}]
  // Predicated region
  $region2: #{tile.8} parent=0 // pred_check
    _
  $region3: #{tile.8} parent=0 // pred_check_branch
    %3 = sbr.rel (0) target = $region5
  $region4: #{tile.8} parent=0 // pred_region
    _
  $region5: #{tile.8} parent=0 // pred_fallthru
    _
  %v4 = vld [vmem:[%s0] ss:$0 sm:$0xff]
  %5 = vst [vmem:[%s1] sm:$0xff] %v4

// kernel: tile.9
$region0: #{tile.9}
  %s0 = inlined_call_operand.vmem [shape: f32[8,16], index: 0, kind: input, shape index: {}]
  %s1 = inlined_call_operand.vmem [shape: f32[1,128], index: 1, kind: output, shape index: {}]
  $region1: #{tile.9} parent=0
    #allocation0 [shape = 'u8[4096]{0}', space=vmem, size = 0x1000, scoped, tag = 'scoped mem for output reshape']
    %v2 = vld [vmem:[%s0] sm:$0x1]
    %vm3 = vcmask 130048
    %4 = vst.msk [vmem:[#allocation0] sm:$0x1] %vm3, %v2
    %s5 = scalar_lea.vmem %s0, 7
    %v6 = vld [vmem:[%s5] sm:$0x1]
    %7 = vrot.lane.b32.xlu0 %v6, 112
    %v8 = vpop.permute.xlu0 %7
    %vm9 = vcmask 1048448
    %10 = vst.msk [vmem:[#allocation0] sm:$0x1] %vm9, %v8
    %s11 = scalar_lea.vmem %s0, 6
    %v12 = vld [vmem:[%s11] sm:$0x1]
    %13 = vrot.lane.b32.xlu0 %v12, 96
    %v14 = vpop.permute.xlu0 %13
    %vm15 = vcmask 917248
    %16 = vst.msk [vmem:[#allocation0] sm:$0x1] %vm15, %v14
    %s17 = scalar_lea.vmem %s0, 5
    %v18 = vld [vmem:[%s17] sm:$0x1]
    %19 = vrot.lane.b32.xlu0 %v18, 80
    %v20 = vpop.permute.xlu0 %19
    %vm21 = vcmask 786048
    %22 = vst.msk [vmem:[#allocation0] sm:$0x1] %vm21, %v20
    %s23 = scalar_lea.vmem %s0, 4
    %v24 = vld [vmem:[%s23] sm:$0x1]
    %25 = vrot.lane.b32.xlu0 %v24, 64
    %v26 = vpop.permute.xlu0 %25
    %vm27 = vcmask 654848
    %28 = vst.msk [vmem:[#allocation0] sm:$0x1] %vm27, %v26
    %s29 = scalar_lea.vmem %s0, 3
    %v30 = vld [vmem:[%s29] sm:$0x1]
    %31 = vrot.lane.b32.xlu0 %v30, 48
    %v32 = vpop.permute.xlu0 %31
    %vm33 = vcmask 523648
    %34 = vst.msk [vmem:[#allocation0] sm:$0x1] %vm33, %v32
    %s35 = scalar_lea.vmem %s0, 2
    %v36 = vld [vmem:[%s35] sm:$0x1]
    %37 = vrot.lane.b32.xlu0 %v36, 32
    %v38 = vpop.permute.xlu0 %37
    %vm39 = vcmask 392448
    %40 = vst.msk [vmem:[#allocation0] sm:$0x1] %vm39, %v38
    %s41 = scalar_lea.vmem %s0, 1
    %v42 = vld [vmem:[%s41] sm:$0x1]
    %43 = vrot.lane.b32.xlu0 %v42, 16
    %v44 = vpop.permute.xlu0 %43
    %vm45 = vcmask 261248
    %46 = vst.msk [vmem:[#allocation0] sm:$0x1] %vm45, %v44
    %s48 = sshllo.u32 0, 1
    %v50 = vld [vmem:[#allocation0] sm:%s48]
    %s51 = sshllo.u32 0, 1
    %52 = vst [vmem:[%s1] sm:%s51] %v50

// kernel: multi_logistic_regression.1
$region0: #{multi_logistic_regression.1}
  #allocation0 [shape = 'u32[]', space=smem, size = 0x4, offset = 0x4, fixed_abs, tag = 'smem constant byte address 0x4 - core index']
  #allocation1 [shape = 'u32[144,128]{1,0:T(1,128)}', space=vmem, size = 0x12000, scoped, tag = 'internal scratch']
  %s0 = inlined_call_operand.vmem [shape: bf16[8,256], index: 0, kind: input, shape index: {}]
  %s1 = inlined_call_operand.vmem [shape: bf16[256,128], index: 1, kind: input, shape index: {}]
  %s2 = inlined_call_operand.vmem [shape: f32[1,128], index: 2, kind: input, shape index: {}]
  %s3 = inlined_call_operand.vmem [shape: f32[8,128], index: 3, kind: output, shape index: {}]
  %s4 = sld [smem:[#allocation0]]
  $region22: #{multi_logistic_regression.1} parent=0
    _
  %s6 = ssub.s32 1, %s4
  %s7 = scalar_select 0, %s6, %s4
  // Predicated region
  $region2: #{multi_logistic_regression.1} parent=0 // pred_check
    _
  $region3: #{multi_logistic_regression.1} parent=0 // pred_check_branch
    %9 = sbr.rel (0) target = $region5
  $region4: #{multi_logistic_regression.1} parent=0 // pred_region
    _
  $region5: #{multi_logistic_regression.1} parent=0 // pred_fallthru
    _
  // Predicated region
  $region6: #{multi_logistic_regression.1} parent=0 // pred_check
    _
  $region7: #{multi_logistic_regression.1} parent=0 // pred_check_branch
    %11 = sbr.rel (0) target = $region9
  $region8: #{multi_logistic_regression.1} parent=0 // pred_region
    _
  $region9: #{multi_logistic_regression.1} parent=0 // pred_fallthru
    _
  // Predicated region
  $region10: #{multi_logistic_regression.1} parent=0 // pred_check
    _
  $region11: #{multi_logistic_regression.1} parent=0 // pred_check_branch
    %13 = sbr.rel (0) target = $region13
  $region12: #{multi_logistic_regression.1} parent=0 // pred_region
    _
  $region13: #{multi_logistic_regression.1} parent=0 // pred_fallthru
    _
  %v15 = vld [vmem:[%s0] sm:$0xff]
  %v16 = vld [vmem:[%s1] sm:$0xf]
  %v17 = vld [vmem:[%s1 + $0x4] sm:$0xf]
  %v18 = vld [vmem:[%s1 + $0x8] sm:$0xf]
  %v19 = vld [vmem:[%s1 + $0xc] sm:$0xf]
  %v20 = vld [vmem:[%s1 + $0x10] sm:$0xf]
  %v21 = vld [vmem:[%s1 + $0x14] sm:$0xf]
  %v22 = vld [vmem:[%s1 + $0x18] sm:$0xf]
  %v23 = vld [vmem:[%s1 + $0x1c] sm:$0xf]
  %v24 = vld [vmem:[%s1 + $0x20] sm:$0xf]
  %v25 = vld [vmem:[%s1 + $0x24] sm:$0xf]
  %v26 = vld [vmem:[%s1 + $0x28] sm:$0xf]
  %v27 = vld [vmem:[%s1 + $0x2c] sm:$0xf]
  %v28 = vld [vmem:[%s1 + $0x30] sm:$0xf]
  %v29 = vld [vmem:[%s1 + $0x34] sm:$0xf]
  %v30 = vld [vmem:[%s1 + $0x38] sm:$0xf]
  %v31 = vld [vmem:[%s1 + $0x3c] sm:$0xf]
  %v32 = vld [vmem:[%s1 + $0x40] sm:$0xf]
  %v33 = vld [vmem:[%s1 + $0x44] sm:$0xf]
  %v34 = vld [vmem:[%s1 + $0x48] sm:$0xf]
  %v35 = vld [vmem:[%s1 + $0x4c] sm:$0xf]
  %v36 = vld [vmem:[%s1 + $0x50] sm:$0xf]
  %v37 = vld [vmem:[%s1 + $0x54] sm:$0xf]
  %v38 = vld [vmem:[%s1 + $0x58] sm:$0xf]
  %v39 = vld [vmem:[%s1 + $0x5c] sm:$0xf]
  %v40 = vld [vmem:[%s1 + $0x60] sm:$0xf]
  %v41 = vld [vmem:[%s1 + $0x64] sm:$0xf]
  %v42 = vld [vmem:[%s1 + $0x68] sm:$0xf]
  %v43 = vld [vmem:[%s1 + $0x6c] sm:$0xf]
  %v44 = vld [vmem:[%s1 + $0x70] sm:$0xf]
  %v45 = vld [vmem:[%s1 + $0x74] sm:$0xf]
  %v46 = vld [vmem:[%s1 + $0x78] sm:$0xf]
  %v47 = vld [vmem:[%s1 + $0x7c] sm:$0xf]
  %v48 = vld [vmem:[%s2] sm:$0x1]
  %v50 = vlaneseq
  %v51 = vshrl.u32 %v50, 7
  %v52 = vsub.s32 0, %v51
  %v53 = vrot.slane %v48, %v52
  %v56 = vunpack.c.l.b16 %v15
  %v57 = vunpack.c.h.b16 %v15
  %v58 = vpack.c.b16 %v56, %v56
  %v59 = vpack.c.b16 %v57, %v57
  %v94 = vunpack.c.l.b16 %v16
  %v95 = vunpack.c.l.b16 %v17
  %v96 = vunpack.c.l.b16 %v18
  %v97 = vunpack.c.l.b16 %v19
  %v98 = vunpack.c.l.b16 %v20
  %v99 = vunpack.c.l.b16 %v21
  %v100 = vunpack.c.l.b16 %v22
  %v101 = vunpack.c.l.b16 %v23
  %v102 = vunpack.c.l.b16 %v24
  %v103 = vunpack.c.l.b16 %v25
  %v104 = vunpack.c.l.b16 %v26
  %v105 = vunpack.c.l.b16 %v27
  %v106 = vunpack.c.l.b16 %v28
  %v107 = vunpack.c.l.b16 %v29
  %v108 = vunpack.c.l.b16 %v30
  %v109 = vunpack.c.l.b16 %v31
  %v110 = vunpack.c.l.b16 %v32
  %v111 = vunpack.c.l.b16 %v33
  %v112 = vunpack.c.l.b16 %v34
  %v113 = vunpack.c.l.b16 %v35
  %v114 = vunpack.c.l.b16 %v36
  %v115 = vunpack.c.l.b16 %v37
  %v116 = vunpack.c.l.b16 %v38
  %v117 = vunpack.c.l.b16 %v39
  %v118 = vunpack.c.l.b16 %v40
  %v119 = vunpack.c.l.b16 %v41
  %v120 = vunpack.c.l.b16 %v42
  %v121 = vunpack.c.l.b16 %v43
  %v122 = vunpack.c.l.b16 %v44
  %v123 = vunpack.c.l.b16 %v45
  %v124 = vunpack.c.l.b16 %v46
  %v125 = vunpack.c.l.b16 %v47
  %v126 = vpack.c.b16 %v95, %v94
  %v127 = vpack.c.b16 %v97, %v96
  %v128 = vpack.c.b16 %v99, %v98
  %v129 = vpack.c.b16 %v101, %v100
  %v130 = vpack.c.b16 %v103, %v102
  %v131 = vpack.c.b16 %v105, %v104
  %v132 = vpack.c.b16 %v107, %v106
  %v133 = vpack.c.b16 %v109, %v108
  %v134 = vpack.c.b16 %v111, %v110
  %v135 = vpack.c.b16 %v113, %v112
  %v136 = vpack.c.b16 %v115, %v114
  %v137 = vpack.c.b16 %v117, %v116
  %v138 = vpack.c.b16 %v119, %v118
  %v139 = vpack.c.b16 %v121, %v120
  %v140 = vpack.c.b16 %v123, %v122
  %v141 = vpack.c.b16 %v125, %v124
  %158 = vmatprep.subr.bf16.mxu0 0
  %159 = vmatpush1.bf16.msra.mxu0 %v126
  %160 = vmatprep.subr.bf16.mxu0 0
  %161 = vmatpush1.bf16.msra.mxu0 %v127
  %162 = vmatprep.subr.bf16.mxu0 0
  %163 = vmatpush1.bf16.msra.mxu0 %v128
  %164 = vmatprep.subr.bf16.mxu0 0
  %165 = vmatpush1.bf16.msra.mxu0 %v129
  %166 = vmatprep.subr.bf16.mxu0 0
  %167 = vmatpush1.bf16.msra.mxu0 %v130
  %168 = vmatprep.subr.bf16.mxu0 0
  %169 = vmatpush1.bf16.msra.mxu0 %v131
  %170 = vmatprep.subr.bf16.mxu0 0
  %171 = vmatpush1.bf16.msra.mxu0 %v132
  %172 = vmatprep.subr.bf16.mxu0 0
  %173 = vmatpush1.bf16.msra.mxu0 %v133
  %174 = vmatprep.subr.bf16.mxu0 0
  %175 = vmatpush1.bf16.msra.mxu0 %v134
  %176 = vmatprep.subr.bf16.mxu0 0
  %177 = vmatpush1.bf16.msra.mxu0 %v135
  %178 = vmatprep.subr.bf16.mxu0 0
  %179 = vmatpush1.bf16.msra.mxu0 %v136
  %180 = vmatprep.subr.bf16.mxu0 0
  %181 = vmatpush1.bf16.msra.mxu0 %v137
  %182 = vmatprep.subr.bf16.mxu0 0
  %183 = vmatpush1.bf16.msra.mxu0 %v138
  %184 = vmatprep.subr.bf16.mxu0 0
  %185 = vmatpush1.bf16.msra.mxu0 %v139
  %186 = vmatprep.subr.bf16.mxu0 0
  %187 = vmatpush1.bf16.msra.mxu0 %v140
  %188 = vmatprep.subr.bf16.mxu0 0
  %189 = vmatpush1.bf16.msra.mxu0 %v141
  %190 = vmatprep.mubr.bf16.mxu0 %v59
  %191 = vmatmul.mubr.bf16.gmra.mrb[0].mxu0 %v58
  %v192 = vpop.f32.mrb[0].mxu0
  %v193 = vadd.f32 %v53, %v192
  %v194 = vpop.f32.mrb[0].mxu0
  %v195 = vpop.f32.mrb[0].mxu0
  %v196 = vpop.f32.mrb[0].mxu0
  %197 = vdwg.mxu0
  %v198 = vxor.u32 %v193, 2147483648
  %v199 = vmul.f32 %v198, 1.442695
  %v200 = vpow.pop %v199
  %v201 = vadd.f32 %v200, 1.0
  %v202 = vrcp.pop %v201
  %v203 = vmul.f32 1.0, %v202
  %204 = vst [vmem:[%s3] sm:$0xff] %v203
  // Predicated region
  $region14: #{multi_logistic_regression.1} parent=0 // pred_check
    _
  $region15: #{multi_logistic_regression.1} parent=0 // pred_check_branch
    %206 = sbr.rel (0) target = $region17
  $region16: #{multi_logistic_regression.1} parent=0 // pred_region
    _
  $region17: #{multi_logistic_regression.1} parent=0 // pred_fallthru
    _
  // Predicated region
  $region18: #{multi_logistic_regression.1} parent=0 // pred_check
    _
  $region19: #{multi_logistic_regression.1} parent=0 // pred_check_branch
    %208 = sbr.rel (0) target = $region21
  $region20: #{multi_logistic_regression.1} parent=0 // pred_region
    _
  $region21: #{multi_logistic_regression.1} parent=0 // pred_fallthru
    _

</llo_original>
